<compile_context>
chip_gen: v5e
topology: v5e:2x2
jax: 0.10.0
libtpu: 0.0.40
codegen_flags: <defaults>
</compile_context>

<pallas_src>
import math
import jax
import jax.numpy as jnp
from jax.experimental import pallas as pl
from jax.experimental.pallas import tpu as pltpu


def _round_up(x, m):
    return ((x + m - 1) // m) * m


def _ahat_z_kernel(a_ref, z_ref, b_ref, o_ref):
    # a_ref : (TM, N_pad)       row tile of the (padded) adjacency
    # z_ref : (N_pad, BO_pad)   batch-folded, lane-padded features (shared)
    # b_ref : (1, BO_pad)       batch-tiled bias (shared, f32)
    # o_ref : (TM, BO_pad)      lane-dense output tile
    acc = jnp.dot(a_ref[...], z_ref[...],
                  preferred_element_type=jnp.float32)   # MXU, f32 accumulate
    o_ref[...] = (acc + b_ref[...]).astype(o_ref.dtype)  # bias add stays f32


def gcn_block_forward(A_hat, X, state, weight, bias, output_size,
                      *, use_bf16=False, row_tile=256):
    """Pallas implementation of GCNBlock.forward.

    A_hat : (N, N) float32
    X     : (B, N) float32
    state : (B, N, G) float32
    weight: (O, G+1) float32   (PyTorch nn.Linear weight layout)
    bias  : (O,) float32
    returns (B, N*O) float32
    """
    B, N = X.shape
    G = state.shape[2]
    O = output_size
    BO = B * O

    # ---- re-associated feature projection (tiny dense op, plain XLA) -------
    x_s = jnp.concatenate([X[..., None], state], axis=2)      # (B, N, F)
    z = jnp.matmul(x_s, weight.T)                             # (B, N, O)
    z = jnp.transpose(z, (1, 0, 2)).reshape(N, BO)            # (N, B*O)
    bias_row = jnp.tile(bias, B).reshape(1, BO)               # (1, B*O)

    # ---- pad for lane density / MXU-friendly row tiles ----------------------
    BO_pad = _round_up(BO, 128)          # lane-dense output slab (unmasked vst)
    if N >= row_tile:
        TM = row_tile
        N_pad = _round_up(N, TM)
    else:
        N_pad = _round_up(N, 8)          # sublane alignment
        TM = N_pad                       # single row tile

    A_p = jnp.pad(A_hat, ((0, N_pad - N), (0, N_pad - N)))
    Z_p = jnp.pad(z, ((0, N_pad - N), (0, BO_pad - BO)))
    b_p = jnp.pad(bias_row, ((0, 0), (0, BO_pad - BO)))

    if use_bf16:
        # bf16 operands for the MXU; accumulation stays f32 in the kernel.
        A_p = A_p.astype(jnp.bfloat16)
        Z_p = Z_p.astype(jnp.bfloat16)

    grid = (N_pad // TM,)

    cost = pl.CostEstimate(
        flops=2 * N_pad * N_pad * BO_pad,
        transcendentals=0,
        bytes_accessed=(A_p.size * A_p.dtype.itemsize
                        + Z_p.size * Z_p.dtype.itemsize
                        + b_p.size * b_p.dtype.itemsize
                        + N_pad * BO_pad * 4),
    )

    out_slab = pl.pallas_call(
        _ahat_z_kernel,
        out_shape=jax.ShapeDtypeStruct((N_pad, BO_pad), jnp.float32),
        grid_spec=pltpu.PrefetchScalarGridSpec(
            num_scalar_prefetch=0,
            grid=grid,
            in_specs=[
                pl.BlockSpec((TM, N_pad), lambda i: (i, 0)),       # A_hat rows
                pl.BlockSpec((N_pad, BO_pad), lambda i: (0, 0)),   # Z (shared)
                pl.BlockSpec((1, BO_pad), lambda i: (0, 0)),       # bias
            ],
            out_specs=pl.BlockSpec((TM, BO_pad), lambda i: (i, 0)),
        ),
        compiler_params=pltpu.CompilerParams(
            dimension_semantics=("parallel",),
            vmem_limit_bytes=32 * 1024 * 1024,
        ),
        cost_estimate=cost,
    )(A_p, Z_p, b_p)

    # un-pad, un-fold the batch, and flatten to (B, N*O)
    out = out_slab[:N, :BO].reshape(N, B, O)
    out = jnp.transpose(out, (1, 0, 2)).reshape(B, N * O)
    return out


def _reference(A_hat, X, state, weight, bias, output_size):
    """Pure-JAX transcription of the PyTorch forward for verification."""
    B, N = X.shape
    x_s = jnp.concatenate([X[..., None], state], axis=2)       # (B, N, F)
    F_ = x_s.shape[2]
    x0 = jnp.transpose(x_s, (1, 2, 0)).reshape(N, -1)          # (N, F*B)
    x1 = A_hat @ x0                                            # (N, F*B)
    x = x1.reshape(N, F_, -1)
    x = jnp.transpose(x, (2, 0, 1)).reshape(-1, F_)            # (B*N, F)
    x = x @ weight.T + bias                                    # (B*N, O)
    return x.reshape(-1, N * output_size)


if __name__ == "__main__":
    # small, shape-consistent problem
    batch = 2
    num_nodes = 16
    gru_units = 32
    output_size = 8

    key = jax.random.PRNGKey(0)
    k1, k2, k3, k4, k5 = jax.random.split(key, 5)

    # inputs
    A_hat = jax.random.uniform(k1, (num_nodes, num_nodes), jnp.float32)
    A_hat = A_hat / jnp.sum(A_hat, axis=1, keepdims=True)      # "normalized" adjacency
    X = jax.random.normal(k2, (batch, num_nodes), jnp.float32)
    state = jax.random.normal(k3, (batch, num_nodes, gru_units), jnp.float32)

    # deterministic parameter init mimicking nn.Linear(gru_units+1, output_size)
    fan_in = gru_units + 1
    bound = 1.0 / math.sqrt(fan_in)
    weight = jax.random.uniform(k4, (output_size, fan_in), jnp.float32,
                                minval=-bound, maxval=bound)
    bias = jax.random.uniform(k5, (output_size,), jnp.float32,
                              minval=-bound, maxval=bound)

    ref = _reference(A_hat, X, state, weight, bias, output_size)

    # f32 path (exact semantics, tight tolerance)
    out = gcn_block_forward(A_hat, X, state, weight, bias, output_size,
                            use_bf16=False)
    out = jax.block_until_ready(out)
    assert out.shape == (batch, num_nodes * output_size)
    assert jnp.allclose(out, ref, atol=1e-4, rtol=1e-4)

    # bf16-operand path (perf configuration for v6e/v7x; f32 accumulation)
    out_bf16 = gcn_block_forward(A_hat, X, state, weight, bias, output_size,
                                 use_bf16=True)
    out_bf16 = jax.block_until_ready(out_bf16)
    assert out_bf16.shape == (batch, num_nodes * output_size)
    assert jnp.allclose(out_bf16, ref, atol=5e-2, rtol=5e-2)

    print("KERNEL_OK")
</pallas_src>

<mosaic_0001>
module attributes {stable_mosaic.version = 11 : i64} {
  func.func @_ahat_z_kernel(%arg0: i32, %arg1: memref<16x16xf32, #tpu.memory_space<vmem>>, %arg2: memref<16x128xf32, #tpu.memory_space<vmem>>, %arg3: memref<1x128xf32, #tpu.memory_space<vmem>>, %arg4: memref<16x128xf32, #tpu.memory_space<vmem>>) attributes {dimension_semantics = [#tpu.dimension_semantics<parallel>], iteration_bounds = array<i64: 1>, scalar_prefetch = 0 : i64, scratch_operands = 0 : i64, tpu.core_type = #tpu.core_type<tc>, window_params = [{transform_indices = @transform_0, window_bounds = array<i64: 16, 16>}, {pipeline_mode = #tpu.pipeline_mode<synchronous>, transform_indices = @transform_1, window_bounds = array<i64: 16, 128>}, {pipeline_mode = #tpu.pipeline_mode<synchronous>, transform_indices = @transform_2, window_bounds = array<i64: 1, 128>}, {transform_indices = @transform_3, window_bounds = array<i64: 16, 128>}]} {
    %c0 = arith.constant 0 : index
    %c0_0 = arith.constant 0 : index
    %0 = vector.load %arg1[%c0, %c0_0] : memref<16x16xf32, #tpu.memory_space<vmem>>, vector<16x16xf32>
    %c0_1 = arith.constant 0 : index
    %c0_2 = arith.constant 0 : index
    %1 = vector.load %arg2[%c0_1, %c0_2] : memref<16x128xf32, #tpu.memory_space<vmem>>, vector<16x128xf32>
    %cst = arith.constant dense<0.000000e+00> : vector<16x128xf32>
    %2 = tpu.matmul %0, %1, %cst {dimension_numbers = #tpu.dot_dimension_numbers<[1], [0], [0], [1], [0, 0, 1, 1], [], []>} : vector<16x16xf32>, vector<16x128xf32>, vector<16x128xf32> -> vector<16x128xf32>
    %c0_3 = arith.constant 0 : index
    %c0_4 = arith.constant 0 : index
    %3 = vector.load %arg3[%c0_3, %c0_4] : memref<1x128xf32, #tpu.memory_space<vmem>>, vector<1x128xf32>
    %4 = vector.broadcast %3 : vector<1x128xf32> to vector<16x128xf32>
    %5 = arith.addf %2, %4 : vector<16x128xf32>
    %c0_5 = arith.constant 0 : index
    %c0_6 = arith.constant 0 : index
    %6 = vector.load %arg4[%c0_5, %c0_6] : memref<16x128xf32, #tpu.memory_space<vmem>>, vector<16x128xf32>
    tpu.vector_store %arg4[%c0_5, %c0_6], %5 {strides = array<i32>} : memref<16x128xf32, #tpu.memory_space<vmem>>, vector<16x128xf32>,
    return
  }
  func.func @transform_0(%arg0: i32) -> (i32, i32) {
    %c0_i32 = arith.constant 0 : i32
    %c0_i32_0 = arith.constant 0 : i32
    return %arg0, %c0_i32 : i32, i32
  }
  func.func @transform_1(%arg0: i32) -> (i32, i32) {
    %c0_i32 = arith.constant 0 : i32
    %c0_i32_0 = arith.constant 0 : i32
    %c0_i32_1 = arith.constant 0 : i32
    return %c0_i32, %c0_i32_0 : i32, i32
  }
  func.func @transform_2(%arg0: i32) -> (i32, i32) {
    %c0_i32 = arith.constant 0 : i32
    %c0_i32_0 = arith.constant 0 : i32
    %c0_i32_1 = arith.constant 0 : i32
    return %c0_i32, %c0_i32_0 : i32, i32
  }
  func.func @transform_3(%arg0: i32) -> (i32, i32) {
    %c0_i32 = arith.constant 0 : i32
    %c0_i32_0 = arith.constant 0 : i32
    return %arg0, %c0_i32 : i32, i32
  }
}

</mosaic_0001>

<llo_original>
// kernel: tpu_custom_call.1
$region0: #{tpu_custom_call.1}
  #allocation0 [shape = 'u32[]', space=smem, size = 0x4, offset = 0x4, fixed_abs, tag = 'smem constant byte address 0x4 - core index']
  #allocation1 [shape = 'u32[72,128]{1,0:T(1,128)}', space=vmem, size = 0x9000, scoped, tag = 'internal scratch']
  %s0 = inlined_call_operand.hbm [shape: f32[16,16], index: 0, kind: input, shape index: {}]
  %s1 = inlined_call_operand.hbm [shape: f32[16,128], index: 1, kind: input, shape index: {}]
  %s2 = inlined_call_operand.vmem [shape: f32[1,128], index: 2, kind: input, shape index: {}]
  %s3 = inlined_call_operand.hbm [shape: f32[16,128], index: 3, kind: output, shape index: {}]
  %s4 = sld [smem:[#allocation0]]
  $region30: #{tpu_custom_call.1} parent=0
    _
  %s6 = ssub.s32 1, %s4
  %s7 = scalar_select 0, %s6, %s4
  $region1: #{tpu_custom_call.1} parent=0
    #allocation2 [shape = 'u8[8192]{0}', space=vmem, size = 0x2000, scoped, tag = 'input window, operand 0, single buffered']
    #allocation3 [shape = 's32[1]{0}', space=sflag, size = 0x4, scoped, tag = 'scoped memory for tpu_custom_call.1']
    #allocation4 [shape = 's32[1]{0}', space=sflag, size = 0x4, scoped, tag = 'scoped memory for tpu_custom_call.1']
    #allocation5 [shape = 'u8[8192]{0}', space=vmem, size = 0x2000, scoped, tag = 'input window, operand 1, single buffered']
    #allocation6 [shape = 's32[1]{0}', space=sflag, size = 0x4, scoped, tag = 'scoped memory for tpu_custom_call.1']
    #allocation7 [shape = 'u8[8192]{0}', space=vmem, size = 0x2000, scoped, tag = 'output window, operand 0, single buffered']
    %8 = vsyncpa [#allocation3], 0
    %9 = vsyncpa [#allocation6], 0
    %10 = vsyncpa [#allocation4], 0
    // Predicated region
    $region2: #{tpu_custom_call.1} parent=1 // pred_check
      _
    $region3: #{tpu_custom_call.1} parent=1 // pred_check_branch
      %12 = sbr.rel (0) target = $region5
    $region4: #{tpu_custom_call.1} parent=1 // pred_region
      %14 = vsyncadd [#allocation3], 0
      %s15 = sshll.u32 %s0, 4
      %s16 = int_to_ptr.hbm [resolvable:$true] %s15
      %s17 = sshll.u32 [#allocation2], 4
      %s18 = int_to_ptr.vmem [resolvable:$true] %s17
      %23 = dma.hbm_to_vmem [thread:$0]  %s16, 256, %s18, [#allocation3], 128, 128, 8
    $region5: #{tpu_custom_call.1} parent=1 // pred_fallthru
      _
    // Predicated region
    $region6: #{tpu_custom_call.1} parent=1 // pred_check
      _
    $region7: #{tpu_custom_call.1} parent=1 // pred_check_branch
      %25 = sbr.rel (0) target = $region9
    $region8: #{tpu_custom_call.1} parent=1 // pred_region
      %27 = vsyncadd [#allocation6], 0
      %s28 = sshll.u32 %s1, 4
      %s29 = int_to_ptr.hbm [resolvable:$true] %s28
      %s30 = sshll.u32 [#allocation5], 4
      %s31 = int_to_ptr.vmem [resolvable:$true] %s30
      %36 = dma.hbm_to_vmem [thread:$0]  %s29, 256, %s31, [#allocation6], 128, 128, 8
    $region9: #{tpu_custom_call.1} parent=1 // pred_fallthru
      _
    // Predicated region
    $region10: #{tpu_custom_call.1} parent=1 // pred_check
      _
    $region11: #{tpu_custom_call.1} parent=1 // pred_check_branch
      %38 = sbr.rel (0) target = $region13
    $region12: #{tpu_custom_call.1} parent=1 // pred_region
      _
    $region13: #{tpu_custom_call.1} parent=1 // pred_fallthru
      _
    // Predicated region
    $region14: #{tpu_custom_call.1} parent=1 // pred_check
      _
    $region15: #{tpu_custom_call.1} parent=1 // pred_check_branch
      %40 = sbr.rel (0) target = $region17
    $region16: #{tpu_custom_call.1} parent=1 // pred_region
      %42 = dma.done [#allocation3], 256
    $region17: #{tpu_custom_call.1} parent=1 // pred_fallthru
      _
    // Predicated region
    $region18: #{tpu_custom_call.1} parent=1 // pred_check
      _
    $region19: #{tpu_custom_call.1} parent=1 // pred_check_branch
      %44 = sbr.rel (0) target = $region21
    $region20: #{tpu_custom_call.1} parent=1 // pred_region
      %46 = dma.done [#allocation6], 256
    $region21: #{tpu_custom_call.1} parent=1 // pred_fallthru
      _
    %v47 = vld [vmem:[#allocation2] sm:$0xff]
    %v48 = vld [vmem:[#allocation2 + $0x8] sm:$0xff]
    %v49 = vld [vmem:[#allocation5] sm:$0xff]
    %v50 = vld [vmem:[#allocation5 + $0x8] sm:$0xff]
    %v51 = vld [vmem:[%s2] sm:$0x1]
    %v53 = vperm.slane %v51, 0
    %vm55 = vcmask 130048
    %v57 = vsel %vm55, %v47, 0
    %v60 = vsel %vm55, %v48, 0
    %62 = vmatpush.msra.mxu0 0.0
    %63 = vmatpush.msra.mxu0 0.0
    %64 = vmatpush.msra.mxu0 0.0
    %65 = vmatpush.msra.mxu0 0.0
    %66 = vmatpush.msra.mxu0 0.0
    %67 = vmatpush.msra.mxu0 0.0
    %68 = vmatpush.msra.mxu0 0.0
    %69 = vmatpush.msra.mxu0 0.0
    %70 = vmatpush.msra.mxu0 0.0
    %71 = vmatpush.msra.mxu0 0.0
    %72 = vmatpush.msra.mxu0 0.0
    %73 = vmatpush.msra.mxu0 0.0
    %74 = vmatpush.msra.mxu0 0.0
    %75 = vmatpush.msra.mxu0 0.0
    %76 = vmatpush.msra.mxu0 %v50
    %77 = vmatpush.msra.mxu0 %v49
    %78 = vmatmul.f32.gmra.mxu0 %v57
    %v79 = vpop.f32.mrf.mxu0
    %v80 = vadd.f32 %v53, %v79
    %81 = vmatmul.f32.gmra.mxu0 %v60
    %v82 = vpop.f32.mrf.mxu0
    %v83 = vadd.f32 %v53, %v82
    %84 = vdwg.mxu0
    %85 = vst [vmem:[#allocation7] sm:$0xff] %v80
    %86 = vst [vmem:[#allocation7 + $0x8] sm:$0xff] %v83
    // Predicated region
    $region22: #{tpu_custom_call.1} parent=1 // pred_check
      _
    $region23: #{tpu_custom_call.1} parent=1 // pred_check_branch
      %88 = sbr.rel (0) target = $region25
    $region24: #{tpu_custom_call.1} parent=1 // pred_region
      %90 = vsyncadd [#allocation4], 0
      %s91 = sshll.u32 [#allocation7], 4
      %s92 = int_to_ptr.vmem [resolvable:$true] %s91
      %s93 = sshll.u32 %s3, 4
      %s94 = int_to_ptr.hbm [resolvable:$true] %s93
      %99 = dma.vmem_to_hbm [thread:$0]  %s92, 256, %s94, [#allocation4], 128, 128, 8
    $region25: #{tpu_custom_call.1} parent=1 // pred_fallthru
      _
    // Predicated region
    $region26: #{tpu_custom_call.1} parent=1 // pred_check
      _
    $region27: #{tpu_custom_call.1} parent=1 // pred_check_branch
      %101 = sbr.rel (0) target = $region29
    $region28: #{tpu_custom_call.1} parent=1 // pred_region
      %103 = dma.done [#allocation4], 256
    $region29: #{tpu_custom_call.1} parent=1 // pred_fallthru
      _
    %104 = vsyncpa [#allocation3], 1
    %105 = vsyncpa [#allocation6], 1
    %106 = vsyncpa [#allocation4], 1

</llo_original>
